<compile_context>
chip_gen: v7x
topology: tpu7x:2x2x1
jax: 0.10.0
libtpu: 0.0.40
codegen_flags: <defaults>
</compile_context>

<pallas_src>
import functools

import jax
import jax.numpy as jnp
from jax.experimental import pallas as pl
from jax.experimental.pallas import tpu as pltpu


def _slab_sum(x, tile_n, slab_rows):
    """Reduce a (tile_n, C) f32 array over the batch (sublane) axis to a
    (slab_rows, C) slab using only layout-aligned vreg adds (VPU).

    slab_rows == 8: tree-add the tile's 8-row slabs (requires tile_n % 8 == 0).
    slab_rows == 1: tiny single-tile fallback (tile_n not a multiple of 8).
    """
    if slab_rows == 1:
        return jnp.sum(x, axis=0, keepdims=True)
    if tile_n == 8:
        return x
    slabs = [x[i * 8:(i + 1) * 8, :] for i in range(tile_n // 8)]
    while len(slabs) > 1:  # short-depth tree of VPU adds
        nxt = [slabs[k] + slabs[k + 1] for k in range(0, len(slabs) - 1, 2)]
        if len(slabs) % 2 == 1:
            nxt.append(slabs[-1])
        slabs = nxt
    return slabs[0]


def _dist_loss_kernel(s_ref, t_ref, corr_out, stats_out,
                      corr_acc, cs_acc, ct_acc, cc_acc, ss_acc, tt_acc,
                      *, n, c, tile_n, slab_rows, steps_per_core, tau, eps):
    j = pl.program_id(1)

    @pl.when(j == 0)
    def _init():
        corr_acc[...] = jnp.zeros_like(corr_acc)
        cs_acc[...] = jnp.zeros_like(cs_acc)
        ct_acc[...] = jnp.zeros_like(ct_acc)
        cc_acc[...] = jnp.zeros_like(cc_acc)
        ss_acc[...] = jnp.zeros_like(ss_acc)
        tt_acc[...] = jnp.zeros_like(tt_acc)

    # Global (unclamped) tile index / first row of this tile. The ragged last
    # tile and the phantom tile of an odd 2-way split (row0 >= n) take the
    # masked branch below.
    g = pl.program_id(0) * steps_per_core + j
    row0 = g * tile_n
    inv_c = 1.0 / c

    def softmax_lastdim(x):
        m = jnp.max(x, axis=1, keepdims=True)
        z = x - m
        if tau != 1.0:                      # static: skip the scale when tau==1
            z = z * (1.0 / tau)
        e = jnp.exp(z)
        inv = pl.reciprocal(jnp.sum(e, axis=1, keepdims=True), approx=False)
        return e * inv                      # reciprocal-multiply, no divides

    def contrib(masked):
        s = s_ref[...].astype(jnp.float32)
        t = t_ref[...].astype(jnp.float32)
        if masked:
            sub = jax.lax.broadcasted_iota(jnp.int32, (tile_n, 1), 0)
            valid = (row0 + sub) < n
            # Sanitize out-of-range rows before exp (partial blocks may carry
            # arbitrary garbage past the end of the array).
            s = jnp.where(valid, s, 0.0)
            t = jnp.where(valid, t, 0.0)

        # Centered probabilities: the per-row mean of softmax is exactly 1/C,
        # so cs/ct are the exactly-centered rows for the inter path and
        # well-conditioned raw statistics for the intra path.
        cs = softmax_lastdim(s) - inv_c
        ct = softmax_lastdim(t) - inv_c
        if masked:
            cs = jnp.where(valid, cs, 0.0)  # invalid rows contribute exactly 0
            ct = jnp.where(valid, ct, 0.0)

        # Products are computed and consumed one at a time to keep the number
        # of simultaneously-live (tile_n, C) f32 temporaries small (v7x VMEM).
        p = cs * ct
        num = jnp.sum(p, axis=1, keepdims=True)              # (TN,1) lane sum
        cc_acc[...] += _slab_sum(p, tile_n, slab_rows)

        p = cs * cs
        ssr = jnp.sum(p, axis=1, keepdims=True)
        ss_acc[...] += _slab_sum(p, tile_n, slab_rows)

        p = ct * ct
        ttr = jnp.sum(p, axis=1, keepdims=True)
        tt_acc[...] += _slab_sum(p, tile_n, slab_rows)

        cs_acc[...] += _slab_sum(cs, tile_n, slab_rows)
        ct_acc[...] += _slab_sum(ct, tile_n, slab_rows)

        # inter: per-row Pearson; masked rows give 0 / (0 + eps) == 0.
        corr = num / (jnp.sqrt(ssr) * jnp.sqrt(ttr) + eps)   # (TN, 1)
        corr_acc[...] += jnp.sum(corr, axis=0, keepdims=True)

    tile_is_full = (row0 + tile_n) <= n

    @pl.when(tile_is_full)
    def _fast():
        contrib(False)

    @pl.when(jnp.logical_not(tile_is_full))
    def _masked():
        contrib(True)

    # Per-core partial results, written once at this core's last step.
    @pl.when(j == steps_per_core - 1)
    def _finalize():
        corr_out[0] = corr_acc[...]
        stats_out[0, 0] = cs_acc[...]
        stats_out[0, 1] = ct_acc[...]
        stats_out[0, 2] = cc_acc[...]
        stats_out[0, 3] = ss_acc[...]
        stats_out[0, 4] = tt_acc[...]


def _vmem_budgets():
    """Return (tiling budget, vmem_limit_bytes) sized per TPU generation."""
    cap = 64 * 1024 * 1024
    try:
        cap = int(getattr(pltpu.get_tpu_info(), "vmem_capacity_bytes", cap))
    except Exception:
        pass
    if cap >= 128 * 1024 * 1024:                 # v5e / v6e: 128 MiB physical
        return 56 * 1024 * 1024, 96 * 1024 * 1024
    return 26 * 1024 * 1024, 48 * 1024 * 1024    # v7x: 64 MiB physical


def _choose_tile_n(n, c, in_itemsize, budget_bytes):
    """Largest batch tile whose pipelined inputs (2 arrays x 2 buffers) plus
    ~6 live f32 (tile_n, C) temporaries fit in budget_bytes. Prefers a tile
    that divides N exactly so the masked-tail branch is never taken."""
    per_row = c * (4 * in_itemsize + 6 * 4)
    cap = max(budget_bytes // max(per_row, 1), 8)
    cap = min(cap, 2048)            # bound the unrolled slab-add tree
    if n <= cap:
        return n                    # whole batch in one tile
    cap = (cap // 8) * 8
    t = cap
    while t >= max(8, cap // 2):    # search for a multiple-of-8 exact divisor
        if n % t == 0:
            return t
        t -= 8
    return cap


def dist_loss(logits_s, logits_t, *, inter_loss_weight=1.0,
              intra_loss_weight=1.0, tau=1.0, loss_weight=1.0,
              teacher_detach=True, input_cast_dtype=None, tile_n=None):
    """DIST knowledge-distillation loss (forward) on TPU via Pallas."""
    if teacher_detach:
        logits_t = jax.lax.stop_gradient(logits_t)

    n, c = logits_s.shape
    assert logits_t.shape == (n, c)

    if input_cast_dtype is not None:   # e.g. jnp.bfloat16 on HBM-bound v5e
        logits_s = logits_s.astype(input_cast_dtype)
        logits_t = logits_t.astype(input_cast_dtype)

    itemsize = max(jnp.dtype(logits_s.dtype).itemsize,
                   jnp.dtype(logits_t.dtype).itemsize)
    budget, vmem_limit = _vmem_budgets()
    if tile_n is None:
        tile_n = _choose_tile_n(n, c, itemsize, budget)
    assert tile_n == n or (tile_n % 8 == 0 and tile_n <= n), tile_n
    slab_rows = 8 if tile_n % 8 == 0 else 1

    total_tiles = pl.cdiv(n, tile_n)
    num_splits = 2 if total_tiles >= 2 else 1   # feed both v7x TensorCores
    steps_per_core = pl.cdiv(total_tiles, num_splits)

    def in_map(core, j):
        # Clamp so the (at most one) phantom tile of an odd split re-reads the
        # last real block; the kernel masks it to a zero contribution.
        g = jnp.minimum(core * steps_per_core + j, total_tiles - 1)
        return (g, 0)

    kernel = functools.partial(
        _dist_loss_kernel,
        n=n, c=c, tile_n=tile_n, slab_rows=slab_rows,
        steps_per_core=steps_per_core, tau=float(tau), eps=1e-8)

    corr_parts, stats_parts = pl.pallas_call(
        kernel,
        out_shape=(
            jax.ShapeDtypeStruct((num_splits, 1, 1), jnp.float32),
            jax.ShapeDtypeStruct((num_splits, 5, slab_rows, c), jnp.float32),
        ),
        grid_spec=pltpu.PrefetchScalarGridSpec(
            num_scalar_prefetch=0,
            grid=(num_splits, steps_per_core),
            in_specs=[
                pl.BlockSpec((tile_n, c), in_map),
                pl.BlockSpec((tile_n, c), in_map),
            ],
            out_specs=[
                pl.BlockSpec((1, 1, 1), lambda core, j: (core, 0, 0)),
                pl.BlockSpec((1, 5, slab_rows, c),
                             lambda core, j: (core, 0, 0, 0)),
            ],
            scratch_shapes=[
                pltpu.VMEM((1, 1), jnp.float32),          # sum of row corrs
                pltpu.VMEM((slab_rows, c), jnp.float32),  # sum (y_s - 1/C)
                pltpu.VMEM((slab_rows, c), jnp.float32),  # sum (y_t - 1/C)
                pltpu.VMEM((slab_rows, c), jnp.float32),  # sum cs*ct
                pltpu.VMEM((slab_rows, c), jnp.float32),  # sum cs^2
                pltpu.VMEM((slab_rows, c), jnp.float32),  # sum ct^2
            ],
        ),
        compiler_params=pltpu.CompilerParams(
            dimension_semantics=("parallel", "arbitrary"),
            vmem_limit_bytes=vmem_limit,
        ),
    )(logits_s, logits_t)

    # Tiny XLA epilogue: merge per-core / per-slab partial sums and form the
    # scalar loss (a handful of ops on a (5, C) array).
    eps = 1e-8
    inv_n = 1.0 / n
    tau2 = float(tau) ** 2

    corr_sum = jnp.sum(corr_parts)
    stats = jnp.sum(stats_parts, axis=(0, 2))     # (5, C)
    sum_cs, sum_ct = stats[0], stats[1]
    sum_cc, sum_ss, sum_tt = stats[2], stats[3], stats[4]

    inter_loss = tau2 * (1.0 - corr_sum * inv_n)

    cov = sum_cc - sum_cs * sum_ct * inv_n
    var_s = jnp.maximum(sum_ss - sum_cs * sum_cs * inv_n, 0.0)
    var_t = jnp.maximum(sum_tt - sum_ct * sum_ct * inv_n, 0.0)
    corr_c = cov / (jnp.sqrt(var_s) * jnp.sqrt(var_t) + eps)
    intra_loss = tau2 * (1.0 - jnp.mean(corr_c))

    kd = inter_loss_weight * inter_loss + intra_loss_weight * intra_loss
    return kd * loss_weight


def _dist_loss_ref(logits_s, logits_t, *, inter_loss_weight=1.0,
                   intra_loss_weight=1.0, tau=1.0, loss_weight=1.0):
    eps = 1e-8
    y_s = jax.nn.softmax(logits_s / tau, axis=1)
    y_t = jax.nn.softmax(logits_t / tau, axis=1)

    def inter(a, b):
        ac = a - a.mean(1, keepdims=True)
        bc = b - b.mean(1, keepdims=True)
        corr = (ac * bc).sum(1) / (
            jnp.linalg.norm(ac, axis=1) * jnp.linalg.norm(bc, axis=1) + eps)
        return 1.0 - corr.mean()

    inter_loss = tau ** 2 * inter(y_s, y_t)
    intra_loss = tau ** 2 * inter(y_s.T, y_t.T)
    return (inter_loss_weight * inter_loss +
            intra_loss_weight * intra_loss) * loss_weight


if __name__ == "__main__":
    key = jax.random.PRNGKey(0)
    k1, k2, k3, k4 = jax.random.split(key, 4)

    # Test 1: single full tile (batch=8, num_classes=32).
    N1, C1 = 8, 32
    s1 = jax.random.normal(k1, (N1, C1), dtype=jnp.float32)
    t1 = jax.random.normal(k2, (N1, C1), dtype=jnp.float32)
    out1 = jax.block_until_ready(dist_loss(s1, t1))
    ref1 = _dist_loss_ref(s1, t1)
    assert jnp.allclose(out1, ref1, atol=2e-5, rtol=2e-5), (out1, ref1)

    # Test 2: multi-tile accumulation with a ragged tail, the 2-way core
    # split, and a phantom (clamped) tile: N=37, tile_n=8 -> 5 tiles.
    N2, C2 = 37, 32
    s2 = jax.random.normal(k3, (N2, C2), dtype=jnp.float32)
    t2 = jax.random.normal(k4, (N2, C2), dtype=jnp.float32)
    out2 = jax.block_until_ready(
        dist_loss(s2, t2, tau=2.0, inter_loss_weight=1.5,
                  intra_loss_weight=0.5, loss_weight=2.0, tile_n=8))
    ref2 = _dist_loss_ref(s2, t2, tau=2.0, inter_loss_weight=1.5,
                          intra_loss_weight=0.5, loss_weight=2.0)
    assert jnp.allclose(out2, ref2, atol=2e-5, rtol=2e-5), (out2, ref2)

    print("KERNEL_OK")
</pallas_src>

<mosaic_0001>
module attributes {stable_mosaic.version = 11 : i64} {
  func.func @_dist_loss_kernel(%arg0: i32, %arg1: i32, %arg2: memref<8x32xf32, #tpu.memory_space<vmem>>, %arg3: memref<8x32xf32, #tpu.memory_space<vmem>>, %arg4: memref<1x1x1xf32, #tpu.memory_space<vmem>>, %arg5: memref<1x5x8x32xf32, #tpu.memory_space<vmem>>, %arg6: memref<1x1xf32, #tpu.memory_space<vmem>>, %arg7: memref<8x32xf32, #tpu.memory_space<vmem>>, %arg8: memref<8x32xf32, #tpu.memory_space<vmem>>, %arg9: memref<8x32xf32, #tpu.memory_space<vmem>>, %arg10: memref<8x32xf32, #tpu.memory_space<vmem>>, %arg11: memref<8x32xf32, #tpu.memory_space<vmem>>) attributes {dimension_semantics = [#tpu.dimension_semantics<parallel>, #tpu.dimension_semantics<arbitrary>], iteration_bounds = array<i64: 1, 1>, scalar_prefetch = 0 : i64, scratch_operands = 6 : i64, tpu.core_type = #tpu.core_type<tc>, window_params = [{transform_indices = @transform_0, window_bounds = array<i64: 8, 32>}, {transform_indices = @transform_1, window_bounds = array<i64: 8, 32>}, {transform_indices = @transform_2, window_bounds = array<i64: 1, 1, 1>}, {transform_indices = @transform_3, window_bounds = array<i64: 1, 5, 8, 32>}]} {
    %c0_i32 = arith.constant 0 : i32
    %0 = arith.cmpi eq, %arg1, %c0_i32 : i32
    %1 = arith.extui %0 : i1 to i32
    %c0_i32_0 = arith.constant 0 : i32
    %2 = arith.cmpi ne, %1, %c0_i32_0 : i32
    scf.if %2 {
      %cst = arith.constant 0.000000e+00 : f32
      %16 = vector.broadcast %cst : f32 to vector<1x1xf32>
      %c0 = arith.constant 0 : index
      %c0_7 = arith.constant 0 : index
      %17 = vector.load %arg6[%c0, %c0_7] : memref<1x1xf32, #tpu.memory_space<vmem>>, vector<1x1xf32>
      tpu.vector_store %arg6[%c0, %c0_7], %16 {strides = array<i32>} : memref<1x1xf32, #tpu.memory_space<vmem>>, vector<1x1xf32>,
      %cst_8 = arith.constant 0.000000e+00 : f32
      %18 = vector.broadcast %cst_8 : f32 to vector<8x32xf32>
      %c0_9 = arith.constant 0 : index
      %c0_10 = arith.constant 0 : index
      %19 = vector.load %arg7[%c0_9, %c0_10] : memref<8x32xf32, #tpu.memory_space<vmem>>, vector<8x32xf32>
      tpu.vector_store %arg7[%c0_9, %c0_10], %18 {strides = array<i32>} : memref<8x32xf32, #tpu.memory_space<vmem>>, vector<8x32xf32>,
      %cst_11 = arith.constant 0.000000e+00 : f32
      %20 = vector.broadcast %cst_11 : f32 to vector<8x32xf32>
      %c0_12 = arith.constant 0 : index
      %c0_13 = arith.constant 0 : index
      %21 = vector.load %arg8[%c0_12, %c0_13] : memref<8x32xf32, #tpu.memory_space<vmem>>, vector<8x32xf32>
      tpu.vector_store %arg8[%c0_12, %c0_13], %20 {strides = array<i32>} : memref<8x32xf32, #tpu.memory_space<vmem>>, vector<8x32xf32>,
      %cst_14 = arith.constant 0.000000e+00 : f32
      %22 = vector.broadcast %cst_14 : f32 to vector<8x32xf32>
      %c0_15 = arith.constant 0 : index
      %c0_16 = arith.constant 0 : index
      %23 = vector.load %arg9[%c0_15, %c0_16] : memref<8x32xf32, #tpu.memory_space<vmem>>, vector<8x32xf32>
      tpu.vector_store %arg9[%c0_15, %c0_16], %22 {strides = array<i32>} : memref<8x32xf32, #tpu.memory_space<vmem>>, vector<8x32xf32>,
      %cst_17 = arith.constant 0.000000e+00 : f32
      %24 = vector.broadcast %cst_17 : f32 to vector<8x32xf32>
      %c0_18 = arith.constant 0 : index
      %c0_19 = arith.constant 0 : index
      %25 = vector.load %arg10[%c0_18, %c0_19] : memref<8x32xf32, #tpu.memory_space<vmem>>, vector<8x32xf32>
      tpu.vector_store %arg10[%c0_18, %c0_19], %24 {strides = array<i32>} : memref<8x32xf32, #tpu.memory_space<vmem>>, vector<8x32xf32>,
      %cst_20 = arith.constant 0.000000e+00 : f32
      %26 = vector.broadcast %cst_20 : f32 to vector<8x32xf32>
      %c0_21 = arith.constant 0 : index
      %c0_22 = arith.constant 0 : index
      %27 = vector.load %arg11[%c0_21, %c0_22] : memref<8x32xf32, #tpu.memory_space<vmem>>, vector<8x32xf32>
      tpu.vector_store %arg11[%c0_21, %c0_22], %26 {strides = array<i32>} : memref<8x32xf32, #tpu.memory_space<vmem>>, vector<8x32xf32>,
    } else {
    }
    %c1_i32 = arith.constant 1 : i32
    %3 = arith.muli %arg0, %c1_i32 : i32
    %4 = arith.addi %3, %arg1 : i32
    %c8_i32 = arith.constant 8 : i32
    %5 = arith.muli %4, %c8_i32 : i32
    %c8_i32_1 = arith.constant 8 : i32
    %6 = arith.addi %5, %c8_i32_1 : i32
    %c8_i32_2 = arith.constant 8 : i32
    %7 = arith.cmpi sle, %6, %c8_i32_2 : i32
    %8 = arith.extui %7 : i1 to i32
    %c0_i32_3 = arith.constant 0 : i32
    %9 = arith.cmpi ne, %8, %c0_i32_3 : i32
    scf.if %9 {
      %c0 = arith.constant 0 : index
      %c0_7 = arith.constant 0 : index
      %16 = vector.load %arg2[%c0, %c0_7] : memref<8x32xf32, #tpu.memory_space<vmem>>, vector<8x32xf32>
      %c0_8 = arith.constant 0 : index
      %c0_9 = arith.constant 0 : index
      %17 = vector.load %arg3[%c0_8, %c0_9] : memref<8x32xf32, #tpu.memory_space<vmem>>, vector<8x32xf32>
      %cst = arith.constant dense<0xFF800000> : vector<8xf32>
      %18 = vector.multi_reduction <maximumf>, %16, %cst [1] : vector<8x32xf32> to vector<8xf32>
      %19 = vector.shape_cast %18 : vector<8xf32> to vector<8x1xf32>
      %20 = vector.broadcast %19 : vector<8x1xf32> to vector<8x32xf32>
      %21 = arith.subf %16, %20 : vector<8x32xf32>
      %22 = math.exp %21 : vector<8x32xf32>
      %cst_10 = arith.constant dense<0.000000e+00> : vector<8xf32>
      %23 = vector.multi_reduction <add>, %22, %cst_10 [1] : vector<8x32xf32> to vector<8xf32>
      %24 = vector.shape_cast %23 : vector<8xf32> to vector<8x1xf32>
      %25 = tpu.reciprocal %24 : vector<8x1xf32> -> vector<8x1xf32>
      %26 = vector.broadcast %25 : vector<8x1xf32> to vector<8x32xf32>
      %27 = arith.mulf %22, %26 : vector<8x32xf32>
      %cst_11 = arith.constant 3.125000e-02 : f32
      %28 = vector.broadcast %cst_11 : f32 to vector<8x32xf32>
      %29 = arith.subf %27, %28 : vector<8x32xf32>
      %cst_12 = arith.constant dense<0xFF800000> : vector<8xf32>
      %30 = vector.multi_reduction <maximumf>, %17, %cst_12 [1] : vector<8x32xf32> to vector<8xf32>
      %31 = vector.shape_cast %30 : vector<8xf32> to vector<8x1xf32>
      %32 = vector.broadcast %31 : vector<8x1xf32> to vector<8x32xf32>
      %33 = arith.subf %17, %32 : vector<8x32xf32>
      %34 = math.exp %33 : vector<8x32xf32>
      %cst_13 = arith.constant dense<0.000000e+00> : vector<8xf32>
      %35 = vector.multi_reduction <add>, %34, %cst_13 [1] : vector<8x32xf32> to vector<8xf32>
      %36 = vector.shape_cast %35 : vector<8xf32> to vector<8x1xf32>
      %37 = tpu.reciprocal %36 : vector<8x1xf32> -> vector<8x1xf32>
      %38 = vector.broadcast %37 : vector<8x1xf32> to vector<8x32xf32>
      %39 = arith.mulf %34, %38 : vector<8x32xf32>
      %cst_14 = arith.constant 3.125000e-02 : f32
      %40 = vector.broadcast %cst_14 : f32 to vector<8x32xf32>
      %41 = arith.subf %39, %40 : vector<8x32xf32>
      %42 = arith.mulf %29, %41 : vector<8x32xf32>
      %cst_15 = arith.constant dense<0.000000e+00> : vector<8xf32>
      %43 = vector.multi_reduction <add>, %42, %cst_15 [1] : vector<8x32xf32> to vector<8xf32>
      %44 = vector.shape_cast %43 : vector<8xf32> to vector<8x1xf32>
      %c0_16 = arith.constant 0 : index
      %c0_17 = arith.constant 0 : index
      %45 = vector.load %arg9[%c0_16, %c0_17] : memref<8x32xf32, #tpu.memory_space<vmem>>, vector<8x32xf32>
      %46 = arith.addf %45, %42 : vector<8x32xf32>
      %c0_18 = arith.constant 0 : index
      %c0_19 = arith.constant 0 : index
      %47 = vector.load %arg9[%c0_18, %c0_19] : memref<8x32xf32, #tpu.memory_space<vmem>>, vector<8x32xf32>
      tpu.vector_store %arg9[%c0_18, %c0_19], %46 {strides = array<i32>} : memref<8x32xf32, #tpu.memory_space<vmem>>, vector<8x32xf32>,
      %48 = arith.mulf %29, %29 : vector<8x32xf32>
      %cst_20 = arith.constant dense<0.000000e+00> : vector<8xf32>
      %49 = vector.multi_reduction <add>, %48, %cst_20 [1] : vector<8x32xf32> to vector<8xf32>
      %50 = vector.shape_cast %49 : vector<8xf32> to vector<8x1xf32>
      %c0_21 = arith.constant 0 : index
      %c0_22 = arith.constant 0 : index
      %51 = vector.load %arg10[%c0_21, %c0_22] : memref<8x32xf32, #tpu.memory_space<vmem>>, vector<8x32xf32>
      %52 = arith.addf %51, %48 : vector<8x32xf32>
      %c0_23 = arith.constant 0 : index
      %c0_24 = arith.constant 0 : index
      %53 = vector.load %arg10[%c0_23, %c0_24] : memref<8x32xf32, #tpu.memory_space<vmem>>, vector<8x32xf32>
      tpu.vector_store %arg10[%c0_23, %c0_24], %52 {strides = array<i32>} : memref<8x32xf32, #tpu.memory_space<vmem>>, vector<8x32xf32>,
      %54 = arith.mulf %41, %41 : vector<8x32xf32>
      %cst_25 = arith.constant dense<0.000000e+00> : vector<8xf32>
      %55 = vector.multi_reduction <add>, %54, %cst_25 [1] : vector<8x32xf32> to vector<8xf32>
      %56 = vector.shape_cast %55 : vector<8xf32> to vector<8x1xf32>
      %c0_26 = arith.constant 0 : index
      %c0_27 = arith.constant 0 : index
      %57 = vector.load %arg11[%c0_26, %c0_27] : memref<8x32xf32, #tpu.memory_space<vmem>>, vector<8x32xf32>
      %58 = arith.addf %57, %54 : vector<8x32xf32>
      %c0_28 = arith.constant 0 : index
      %c0_29 = arith.constant 0 : index
      %59 = vector.load %arg11[%c0_28, %c0_29] : memref<8x32xf32, #tpu.memory_space<vmem>>, vector<8x32xf32>
      tpu.vector_store %arg11[%c0_28, %c0_29], %58 {strides = array<i32>} : memref<8x32xf32, #tpu.memory_space<vmem>>, vector<8x32xf32>,
      %c0_30 = arith.constant 0 : index
      %c0_31 = arith.constant 0 : index
      %60 = vector.load %arg7[%c0_30, %c0_31] : memref<8x32xf32, #tpu.memory_space<vmem>>, vector<8x32xf32>
      %61 = arith.addf %60, %29 : vector<8x32xf32>
      %c0_32 = arith.constant 0 : index
      %c0_33 = arith.constant 0 : index
      %62 = vector.load %arg7[%c0_32, %c0_33] : memref<8x32xf32, #tpu.memory_space<vmem>>, vector<8x32xf32>
      tpu.vector_store %arg7[%c0_32, %c0_33], %61 {strides = array<i32>} : memref<8x32xf32, #tpu.memory_space<vmem>>, vector<8x32xf32>,
      %c0_34 = arith.constant 0 : index
      %c0_35 = arith.constant 0 : index
      %63 = vector.load %arg8[%c0_34, %c0_35] : memref<8x32xf32, #tpu.memory_space<vmem>>, vector<8x32xf32>
      %64 = arith.addf %63, %41 : vector<8x32xf32>
      %c0_36 = arith.constant 0 : index
      %c0_37 = arith.constant 0 : index
      %65 = vector.load %arg8[%c0_36, %c0_37] : memref<8x32xf32, #tpu.memory_space<vmem>>, vector<8x32xf32>
      tpu.vector_store %arg8[%c0_36, %c0_37], %64 {strides = array<i32>} : memref<8x32xf32, #tpu.memory_space<vmem>>, vector<8x32xf32>,
      %66 = math.sqrt %50 : vector<8x1xf32>
      %67 = math.sqrt %56 : vector<8x1xf32>
      %68 = arith.mulf %66, %67 : vector<8x1xf32>
      %cst_38 = arith.constant 9.99999993E-9 : f32
      %69 = vector.broadcast %cst_38 : f32 to vector<8x1xf32>
      %70 = arith.addf %68, %69 : vector<8x1xf32>
      %71 = arith.divf %44, %70 : vector<8x1xf32>
      %c0_39 = arith.constant 0 : index
      %c0_40 = arith.constant 0 : index
      %72 = vector.load %arg6[%c0_39, %c0_40] : memref<1x1xf32, #tpu.memory_space<vmem>>, vector<1x1xf32>
      %cst_41 = arith.constant dense<0.000000e+00> : vector<1xf32>
      %73 = vector.multi_reduction <add>, %71, %cst_41 [0] : vector<8x1xf32> to vector<1xf32>
      %74 = vector.shape_cast %73 : vector<1xf32> to vector<1x1xf32>
      %75 = arith.addf %72, %74 : vector<1x1xf32>
      %c0_42 = arith.constant 0 : index
      %c0_43 = arith.constant 0 : index
      %76 = vector.load %arg6[%c0_42, %c0_43] : memref<1x1xf32, #tpu.memory_space<vmem>>, vector<1x1xf32>
      tpu.vector_store %arg6[%c0_42, %c0_43], %75 {strides = array<i32>} : memref<1x1xf32, #tpu.memory_space<vmem>>, vector<1x1xf32>,
    } else {
    }
    %true = arith.constant true
    %10 = arith.xori %7, %true : i1
    %11 = arith.extui %10 : i1 to i32
    %c0_i32_4 = arith.constant 0 : i32
    %12 = arith.cmpi ne, %11, %c0_i32_4 : i32
    scf.if %12 {
      %c0 = arith.constant 0 : index
      %c0_7 = arith.constant 0 : index
      %16 = vector.load %arg2[%c0, %c0_7] : memref<8x32xf32, #tpu.memory_space<vmem>>, vector<8x32xf32>
      %c0_8 = arith.constant 0 : index
      %c0_9 = arith.constant 0 : index
      %17 = vector.load %arg3[%c0_8, %c0_9] : memref<8x32xf32, #tpu.memory_space<vmem>>, vector<8x32xf32>
      %18 = tpu.iota {dimensions = array<i32: 0>} : vector<8x1xi32>
      %19 = vector.broadcast %5 : i32 to vector<8x1xi32>
      %20 = arith.addi %19, %18 : vector<8x1xi32>
      %c8_i32_10 = arith.constant 8 : i32
      %21 = vector.broadcast %c8_i32_10 : i32 to vector<8x1xi32>
      %22 = arith.cmpi slt, %20, %21 : vector<8x1xi32>
      %cst = arith.constant 0.000000e+00 : f32
      %23 = vector.shape_cast %22 : vector<8x1xi1> to vector<8x1xi1>
      %24 = vector.broadcast %23 : vector<8x1xi1> to vector<8x32xi1>
      %25 = vector.broadcast %cst : f32 to vector<8x32xf32>
      %26 = arith.select %24, %16, %25 : vector<8x32xi1>, vector<8x32xf32>
      %cst_11 = arith.constant 0.000000e+00 : f32
      %27 = vector.shape_cast %22 : vector<8x1xi1> to vector<8x1xi1>
      %28 = vector.broadcast %27 : vector<8x1xi1> to vector<8x32xi1>
      %29 = vector.broadcast %cst_11 : f32 to vector<8x32xf32>
      %30 = arith.select %28, %17, %29 : vector<8x32xi1>, vector<8x32xf32>
      %cst_12 = arith.constant dense<0xFF800000> : vector<8xf32>
      %31 = vector.multi_reduction <maximumf>, %26, %cst_12 [1] : vector<8x32xf32> to vector<8xf32>
      %32 = vector.shape_cast %31 : vector<8xf32> to vector<8x1xf32>
      %33 = vector.broadcast %32 : vector<8x1xf32> to vector<8x32xf32>
      %34 = arith.subf %26, %33 : vector<8x32xf32>
      %35 = math.exp %34 : vector<8x32xf32>
      %cst_13 = arith.constant dense<0.000000e+00> : vector<8xf32>
      %36 = vector.multi_reduction <add>, %35, %cst_13 [1] : vector<8x32xf32> to vector<8xf32>
      %37 = vector.shape_cast %36 : vector<8xf32> to vector<8x1xf32>
      %38 = tpu.reciprocal %37 : vector<8x1xf32> -> vector<8x1xf32>
      %39 = vector.broadcast %38 : vector<8x1xf32> to vector<8x32xf32>
      %40 = arith.mulf %35, %39 : vector<8x32xf32>
      %cst_14 = arith.constant 3.125000e-02 : f32
      %41 = vector.broadcast %cst_14 : f32 to vector<8x32xf32>
      %42 = arith.subf %40, %41 : vector<8x32xf32>
      %cst_15 = arith.constant dense<0xFF800000> : vector<8xf32>
      %43 = vector.multi_reduction <maximumf>, %30, %cst_15 [1] : vector<8x32xf32> to vector<8xf32>
      %44 = vector.shape_cast %43 : vector<8xf32> to vector<8x1xf32>
      %45 = vector.broadcast %44 : vector<8x1xf32> to vector<8x32xf32>
      %46 = arith.subf %30, %45 : vector<8x32xf32>
      %47 = math.exp %46 : vector<8x32xf32>
      %cst_16 = arith.constant dense<0.000000e+00> : vector<8xf32>
      %48 = vector.multi_reduction <add>, %47, %cst_16 [1] : vector<8x32xf32> to vector<8xf32>
      %49 = vector.shape_cast %48 : vector<8xf32> to vector<8x1xf32>
      %50 = tpu.reciprocal %49 : vector<8x1xf32> -> vector<8x1xf32>
      %51 = vector.broadcast %50 : vector<8x1xf32> to vector<8x32xf32>
      %52 = arith.mulf %47, %51 : vector<8x32xf32>
      %cst_17 = arith.constant 3.125000e-02 : f32
      %53 = vector.broadcast %cst_17 : f32 to vector<8x32xf32>
      %54 = arith.subf %52, %53 : vector<8x32xf32>
      %cst_18 = arith.constant 0.000000e+00 : f32
      %55 = vector.shape_cast %22 : vector<8x1xi1> to vector<8x1xi1>
      %56 = vector.broadcast %55 : vector<8x1xi1> to vector<8x32xi1>
      %57 = vector.broadcast %cst_18 : f32 to vector<8x32xf32>
      %58 = arith.select %56, %42, %57 : vector<8x32xi1>, vector<8x32xf32>
      %cst_19 = arith.constant 0.000000e+00 : f32
      %59 = vector.shape_cast %22 : vector<8x1xi1> to vector<8x1xi1>
      %60 = vector.broadcast %59 : vector<8x1xi1> to vector<8x32xi1>
      %61 = vector.broadcast %cst_19 : f32 to vector<8x32xf32>
      %62 = arith.select %60, %54, %61 : vector<8x32xi1>, vector<8x32xf32>
      %63 = arith.mulf %58, %62 : vector<8x32xf32>
      %cst_20 = arith.constant dense<0.000000e+00> : vector<8xf32>
      %64 = vector.multi_reduction <add>, %63, %cst_20 [1] : vector<8x32xf32> to vector<8xf32>
      %65 = vector.shape_cast %64 : vector<8xf32> to vector<8x1xf32>
      %c0_21 = arith.constant 0 : index
      %c0_22 = arith.constant 0 : index
      %66 = vector.load %arg9[%c0_21, %c0_22] : memref<8x32xf32, #tpu.memory_space<vmem>>, vector<8x32xf32>
      %67 = arith.addf %66, %63 : vector<8x32xf32>
      %c0_23 = arith.constant 0 : index
      %c0_24 = arith.constant 0 : index
      %68 = vector.load %arg9[%c0_23, %c0_24] : memref<8x32xf32, #tpu.memory_space<vmem>>, vector<8x32xf32>
      tpu.vector_store %arg9[%c0_23, %c0_24], %67 {strides = array<i32>} : memref<8x32xf32, #tpu.memory_space<vmem>>, vector<8x32xf32>,
      %69 = arith.mulf %58, %58 : vector<8x32xf32>
      %cst_25 = arith.constant dense<0.000000e+00> : vector<8xf32>
      %70 = vector.multi_reduction <add>, %69, %cst_25 [1] : vector<8x32xf32> to vector<8xf32>
      %71 = vector.shape_cast %70 : vector<8xf32> to vector<8x1xf32>
      %c0_26 = arith.constant 0 : index
      %c0_27 = arith.constant 0 : index
      %72 = vector.load %arg10[%c0_26, %c0_27] : memref<8x32xf32, #tpu.memory_space<vmem>>, vector<8x32xf32>
      %73 = arith.addf %72, %69 : vector<8x32xf32>
      %c0_28 = arith.constant 0 : index
      %c0_29 = arith.constant 0 : index
      %74 = vector.load %arg10[%c0_28, %c0_29] : memref<8x32xf32, #tpu.memory_space<vmem>>, vector<8x32xf32>
      tpu.vector_store %arg10[%c0_28, %c0_29], %73 {strides = array<i32>} : memref<8x32xf32, #tpu.memory_space<vmem>>, vector<8x32xf32>,
      %75 = arith.mulf %62, %62 : vector<8x32xf32>
      %cst_30 = arith.constant dense<0.000000e+00> : vector<8xf32>
      %76 = vector.multi_reduction <add>, %75, %cst_30 [1] : vector<8x32xf32> to vector<8xf32>
      %77 = vector.shape_cast %76 : vector<8xf32> to vector<8x1xf32>
      %c0_31 = arith.constant 0 : index
      %c0_32 = arith.constant 0 : index
      %78 = vector.load %arg11[%c0_31, %c0_32] : memref<8x32xf32, #tpu.memory_space<vmem>>, vector<8x32xf32>
      %79 = arith.addf %78, %75 : vector<8x32xf32>
      %c0_33 = arith.constant 0 : index
      %c0_34 = arith.constant 0 : index
      %80 = vector.load %arg11[%c0_33, %c0_34] : memref<8x32xf32, #tpu.memory_space<vmem>>, vector<8x32xf32>
      tpu.vector_store %arg11[%c0_33, %c0_34], %79 {strides = array<i32>} : memref<8x32xf32, #tpu.memory_space<vmem>>, vector<8x32xf32>,
      %c0_35 = arith.constant 0 : index
      %c0_36 = arith.constant 0 : index
      %81 = vector.load %arg7[%c0_35, %c0_36] : memref<8x32xf32, #tpu.memory_space<vmem>>, vector<8x32xf32>
      %82 = arith.addf %81, %58 : vector<8x32xf32>
      %c0_37 = arith.constant 0 : index
      %c0_38 = arith.constant 0 : index
      %83 = vector.load %arg7[%c0_37, %c0_38] : memref<8x32xf32, #tpu.memory_space<vmem>>, vector<8x32xf32>
      tpu.vector_store %arg7[%c0_37, %c0_38], %82 {strides = array<i32>} : memref<8x32xf32, #tpu.memory_space<vmem>>, vector<8x32xf32>,
      %c0_39 = arith.constant 0 : index
      %c0_40 = arith.constant 0 : index
      %84 = vector.load %arg8[%c0_39, %c0_40] : memref<8x32xf32, #tpu.memory_space<vmem>>, vector<8x32xf32>
      %85 = arith.addf %84, %62 : vector<8x32xf32>
      %c0_41 = arith.constant 0 : index
      %c0_42 = arith.constant 0 : index
      %86 = vector.load %arg8[%c0_41, %c0_42] : memref<8x32xf32, #tpu.memory_space<vmem>>, vector<8x32xf32>
      tpu.vector_store %arg8[%c0_41, %c0_42], %85 {strides = array<i32>} : memref<8x32xf32, #tpu.memory_space<vmem>>, vector<8x32xf32>,
      %87 = math.sqrt %71 : vector<8x1xf32>
      %88 = math.sqrt %77 : vector<8x1xf32>
      %89 = arith.mulf %87, %88 : vector<8x1xf32>
      %cst_43 = arith.constant 9.99999993E-9 : f32
      %90 = vector.broadcast %cst_43 : f32 to vector<8x1xf32>
      %91 = arith.addf %89, %90 : vector<8x1xf32>
      %92 = arith.divf %65, %91 : vector<8x1xf32>
      %c0_44 = arith.constant 0 : index
      %c0_45 = arith.constant 0 : index
      %93 = vector.load %arg6[%c0_44, %c0_45] : memref<1x1xf32, #tpu.memory_space<vmem>>, vector<1x1xf32>
      %cst_46 = arith.constant dense<0.000000e+00> : vector<1xf32>
      %94 = vector.multi_reduction <add>, %92, %cst_46 [0] : vector<8x1xf32> to vector<1xf32>
      %95 = vector.shape_cast %94 : vector<1xf32> to vector<1x1xf32>
      %96 = arith.addf %93, %95 : vector<1x1xf32>
      %c0_47 = arith.constant 0 : index
      %c0_48 = arith.constant 0 : index
      %97 = vector.load %arg6[%c0_47, %c0_48] : memref<1x1xf32, #tpu.memory_space<vmem>>, vector<1x1xf32>
      tpu.vector_store %arg6[%c0_47, %c0_48], %96 {strides = array<i32>} : memref<1x1xf32, #tpu.memory_space<vmem>>, vector<1x1xf32>,
    } else {
    }
    %c0_i32_5 = arith.constant 0 : i32
    %13 = arith.cmpi eq, %arg1, %c0_i32_5 : i32
    %14 = arith.extui %13 : i1 to i32
    %c0_i32_6 = arith.constant 0 : i32
    %15 = arith.cmpi ne, %14, %c0_i32_6 : i32
    scf.if %15 {
      %c0 = arith.constant 0 : index
      %c0_7 = arith.constant 0 : index
      %16 = vector.load %arg6[%c0, %c0_7] : memref<1x1xf32, #tpu.memory_space<vmem>>, vector<1x1xf32>
      %c0_8 = arith.constant 0 : index
      %c0_9 = arith.constant 0 : index
      %c0_10 = arith.constant 0 : index
      %17 = vector.load %arg4[%c0_8, %c0_9, %c0_10] : memref<1x1x1xf32, #tpu.memory_space<vmem>>, vector<1x1x1xf32>
      %18 = vector.shape_cast %17 : vector<1x1x1xf32> to vector<1x1xf32>
      %19 = vector.shape_cast %16 : vector<1x1xf32> to vector<1x1x1xf32>
      tpu.vector_store %arg4[%c0_8, %c0_9, %c0_10], %19 {strides = array<i32>} : memref<1x1x1xf32, #tpu.memory_space<vmem>>, vector<1x1x1xf32>,
      %c0_11 = arith.constant 0 : index
      %c0_12 = arith.constant 0 : index
      %20 = vector.load %arg7[%c0_11, %c0_12] : memref<8x32xf32, #tpu.memory_space<vmem>>, vector<8x32xf32>
      %c0_13 = arith.constant 0 : index
      %c0_14 = arith.constant 0 : index
      %c0_15 = arith.constant 0 : index
      %c0_16 = arith.constant 0 : index
      %21 = vector.load %arg5[%c0_13, %c0_14, %c0_15, %c0_16] : memref<1x5x8x32xf32, #tpu.memory_space<vmem>>, vector<1x1x8x32xf32>
      %22 = vector.shape_cast %21 : vector<1x1x8x32xf32> to vector<8x32xf32>
      %23 = vector.shape_cast %20 : vector<8x32xf32> to vector<1x1x8x32xf32>
      tpu.vector_store %arg5[%c0_13, %c0_14, %c0_15, %c0_16], %23 {strides = array<i32>} : memref<1x5x8x32xf32, #tpu.memory_space<vmem>>, vector<1x1x8x32xf32>,
      %c0_17 = arith.constant 0 : index
      %c0_18 = arith.constant 0 : index
      %24 = vector.load %arg8[%c0_17, %c0_18] : memref<8x32xf32, #tpu.memory_space<vmem>>, vector<8x32xf32>
      %c0_19 = arith.constant 0 : index
      %c1 = arith.constant 1 : index
      %c0_20 = arith.constant 0 : index
      %c0_21 = arith.constant 0 : index
      %25 = vector.load %arg5[%c0_19, %c1, %c0_20, %c0_21] : memref<1x5x8x32xf32, #tpu.memory_space<vmem>>, vector<1x1x8x32xf32>
      %26 = vector.shape_cast %25 : vector<1x1x8x32xf32> to vector<8x32xf32>
      %27 = vector.shape_cast %24 : vector<8x32xf32> to vector<1x1x8x32xf32>
      tpu.vector_store %arg5[%c0_19, %c1, %c0_20, %c0_21], %27 {strides = array<i32>} : memref<1x5x8x32xf32, #tpu.memory_space<vmem>>, vector<1x1x8x32xf32>,
      %c0_22 = arith.constant 0 : index
      %c0_23 = arith.constant 0 : index
      %28 = vector.load %arg9[%c0_22, %c0_23] : memref<8x32xf32, #tpu.memory_space<vmem>>, vector<8x32xf32>
      %c0_24 = arith.constant 0 : index
      %c2 = arith.constant 2 : index
      %c0_25 = arith.constant 0 : index
      %c0_26 = arith.constant 0 : index
      %29 = vector.load %arg5[%c0_24, %c2, %c0_25, %c0_26] : memref<1x5x8x32xf32, #tpu.memory_space<vmem>>, vector<1x1x8x32xf32>
      %30 = vector.shape_cast %29 : vector<1x1x8x32xf32> to vector<8x32xf32>
      %31 = vector.shape_cast %28 : vector<8x32xf32> to vector<1x1x8x32xf32>
      tpu.vector_store %arg5[%c0_24, %c2, %c0_25, %c0_26], %31 {strides = array<i32>} : memref<1x5x8x32xf32, #tpu.memory_space<vmem>>, vector<1x1x8x32xf32>,
      %c0_27 = arith.constant 0 : index
      %c0_28 = arith.constant 0 : index
      %32 = vector.load %arg10[%c0_27, %c0_28] : memref<8x32xf32, #tpu.memory_space<vmem>>, vector<8x32xf32>
      %c0_29 = arith.constant 0 : index
      %c3 = arith.constant 3 : index
      %c0_30 = arith.constant 0 : index
      %c0_31 = arith.constant 0 : index
      %33 = vector.load %arg5[%c0_29, %c3, %c0_30, %c0_31] : memref<1x5x8x32xf32, #tpu.memory_space<vmem>>, vector<1x1x8x32xf32>
      %34 = vector.shape_cast %33 : vector<1x1x8x32xf32> to vector<8x32xf32>
      %35 = vector.shape_cast %32 : vector<8x32xf32> to vector<1x1x8x32xf32>
      tpu.vector_store %arg5[%c0_29, %c3, %c0_30, %c0_31], %35 {strides = array<i32>} : memref<1x5x8x32xf32, #tpu.memory_space<vmem>>, vector<1x1x8x32xf32>,
      %c0_32 = arith.constant 0 : index
      %c0_33 = arith.constant 0 : index
      %36 = vector.load %arg11[%c0_32, %c0_33] : memref<8x32xf32, #tpu.memory_space<vmem>>, vector<8x32xf32>
      %c0_34 = arith.constant 0 : index
      %c4 = arith.constant 4 : index
      %c0_35 = arith.constant 0 : index
      %c0_36 = arith.constant 0 : index
      %37 = vector.load %arg5[%c0_34, %c4, %c0_35, %c0_36] : memref<1x5x8x32xf32, #tpu.memory_space<vmem>>, vector<1x1x8x32xf32>
      %38 = vector.shape_cast %37 : vector<1x1x8x32xf32> to vector<8x32xf32>
      %39 = vector.shape_cast %36 : vector<8x32xf32> to vector<1x1x8x32xf32>
      tpu.vector_store %arg5[%c0_34, %c4, %c0_35, %c0_36], %39 {strides = array<i32>} : memref<1x5x8x32xf32, #tpu.memory_space<vmem>>, vector<1x1x8x32xf32>,
    } else {
    }
    return
  }
  func.func @transform_0(%arg0: i32, %arg1: i32) -> (i32, i32) {
    %c1_i32 = arith.constant 1 : i32
    %0 = arith.muli %arg0, %c1_i32 : i32
    %1 = arith.addi %0, %arg1 : i32
    %c0_i32 = arith.constant 0 : i32
    %2 = arith.minsi %1, %c0_i32 : i32
    %c0_i32_0 = arith.constant 0 : i32
    %c0_i32_1 = arith.constant 0 : i32
    return %2, %c0_i32_0 : i32, i32
  }
  func.func @transform_1(%arg0: i32, %arg1: i32) -> (i32, i32) {
    %c1_i32 = arith.constant 1 : i32
    %0 = arith.muli %arg0, %c1_i32 : i32
    %1 = arith.addi %0, %arg1 : i32
    %c0_i32 = arith.constant 0 : i32
    %2 = arith.minsi %1, %c0_i32 : i32
    %c0_i32_0 = arith.constant 0 : i32
    %c0_i32_1 = arith.constant 0 : i32
    return %2, %c0_i32_0 : i32, i32
  }
  func.func @transform_2(%arg0: i32, %arg1: i32) -> (i32, i32, i32) {
    %c0_i32 = arith.constant 0 : i32
    %c0_i32_0 = arith.constant 0 : i32
    %c0_i32_1 = arith.constant 0 : i32
    return %arg0, %c0_i32, %c0_i32_0 : i32, i32, i32
  }
  func.func @transform_3(%arg0: i32, %arg1: i32) -> (i32, i32, i32, i32) {
    %c0_i32 = arith.constant 0 : i32
    %c0_i32_0 = arith.constant 0 : i32
    %c0_i32_1 = arith.constant 0 : i32
    %c0_i32_2 = arith.constant 0 : i32
    return %arg0, %c0_i32, %c0_i32_0, %c0_i32_1 : i32, i32, i32, i32
  }
}

</mosaic_0001>

<llo_original>
// kernel: tpu_custom_call.1
$region0: #{tpu_custom_call.1}
  #allocation0 [shape = 'u32[]', space=smem, size = 0x4, offset = 0x4, fixed_abs, tag = 'smem constant byte address 0x4 - core index']
  #allocation1 [shape = 'u32[144,128]{1,0:T(1,128)}', space=vmem, size = 0x12000, scoped, tag = 'internal scratch']
  #allocation2 [shape = 'f32[1,1]{1,0:T(1,128)}', space=vmem, size = 0x200, scoped, tag = 'scratch operand']
  #allocation3 [shape = 'f32[8,32]{1,0:T(8,128)}', space=vmem, size = 0x1000, scoped, tag = 'scratch operand']
  #allocation4 [shape = 'f32[8,32]{1,0:T(8,128)}', space=vmem, size = 0x1000, scoped, tag = 'scratch operand']
  #allocation5 [shape = 'f32[8,32]{1,0:T(8,128)}', space=vmem, size = 0x1000, scoped, tag = 'scratch operand']
  #allocation6 [shape = 'f32[8,32]{1,0:T(8,128)}', space=vmem, size = 0x1000, scoped, tag = 'scratch operand']
  #allocation7 [shape = 'f32[8,32]{1,0:T(8,128)}', space=vmem, size = 0x1000, scoped, tag = 'scratch operand']
  %s0 = inlined_call_operand.hbm [shape: f32[8,32], index: 0, kind: input, shape index: {}]
  %s1 = inlined_call_operand.hbm [shape: f32[8,32], index: 1, kind: input, shape index: {}]
  %s2 = inlined_call_operand.hbm [shape: f32[1,1,1], index: 2, kind: output, shape index: {0}]
  %s3 = inlined_call_operand.hbm [shape: f32[1,5,8,32], index: 3, kind: output, shape index: {1}]
  %4 = xla_tuple %s2, %s3
  %s5 = sld [smem:[#allocation0]]
  $region50: #{tpu_custom_call.1} parent=0
    _
  %s7 = ssub.s32 1, %s5
  %s8 = scalar_select 0, %s7, %s5
  $region1: #{tpu_custom_call.1} parent=0
    #allocation8 [shape = 'u8[4096]{0}', space=vmem, size = 0x1000, scoped, tag = 'input window, operand 0, single buffered']
    #allocation9 [shape = 's32[1]{0}', space=sflag, size = 0x4, scoped, tag = 'scoped memory for tpu_custom_call.1']
    #allocation10 [shape = 's32[1]{0}', space=sflag, size = 0x4, scoped, tag = 'scoped memory for tpu_custom_call.1']
    #allocation11 [shape = 'u8[4096]{0}', space=vmem, size = 0x1000, scoped, tag = 'input window, operand 1, single buffered']
    #allocation12 [shape = 's32[1]{0}', space=sflag, size = 0x4, scoped, tag = 'scoped memory for tpu_custom_call.1']
    #allocation13 [shape = 'u8[512]{0}', space=vmem, size = 0x400, scoped, tag = 'output window, operand 0, single buffered']
    #allocation14 [shape = 'u8[20480]{0}', space=vmem, size = 0x5000, scoped, tag = 'output window, operand 1, single buffered']
    #allocation15 [shape = 's32[1]{0}', space=sflag, size = 0x4, scoped, tag = 'scoped memory for tpu_custom_call.1']
    %9 = vsyncpa [#allocation9], 0
    %10 = vsyncpa [#allocation12], 0
    %11 = vsyncpa [#allocation10], 0
    %12 = vsyncpa [#allocation15], 0
    // Predicated region
    $region2: #{tpu_custom_call.1} parent=1 // pred_check
      _
    $region3: #{tpu_custom_call.1} parent=1 // pred_check_branch
      %14 = sbr.rel (0) target = $region5
    $region4: #{tpu_custom_call.1} parent=1 // pred_region
      %s15 = sadd.s32 0, 0
      %p16 = scmp.lt.s32.totalorder %s15, 0
      %s17 = scalar_select %p16, %s15, 0
      %s19 = ssub.s32 128, 128
      %20 = vsyncadd [#allocation9], %s19
      %s21 = smul.addr %s17, 128
      %s22 = scalar_lea.hbm %s0, %s21
      %s24 = sshll.u32 [#allocation8], 4
      %s25 = int_to_ptr.vmem [resolvable:$true] %s24
      %27 = dma.hbm_to_vmem [thread:$0]  %s22, 128, %s25, [#allocation9]
    $region5: #{tpu_custom_call.1} parent=1 // pred_fallthru
      _
    // Predicated region
    $region6: #{tpu_custom_call.1} parent=1 // pred_check
      _
    $region7: #{tpu_custom_call.1} parent=1 // pred_check_branch
      %29 = sbr.rel (0) target = $region9
    $region8: #{tpu_custom_call.1} parent=1 // pred_region
      %s30 = sadd.s32 0, 0
      %p31 = scmp.lt.s32.totalorder %s30, 0
      %s32 = scalar_select %p31, %s30, 0
      %s34 = ssub.s32 128, 128
      %35 = vsyncadd [#allocation12], %s34
      %s36 = smul.addr %s32, 128
      %s37 = scalar_lea.hbm %s1, %s36
      %s39 = sshll.u32 [#allocation11], 4
      %s40 = int_to_ptr.vmem [resolvable:$true] %s39
      %42 = dma.hbm_to_vmem [thread:$0]  %s37, 128, %s40, [#allocation12]
    $region9: #{tpu_custom_call.1} parent=1 // pred_fallthru
      _
    // Predicated region
    $region10: #{tpu_custom_call.1} parent=1 // pred_check
      _
    $region11: #{tpu_custom_call.1} parent=1 // pred_check_branch
      %44 = sbr.rel (0) target = $region13
    $region12: #{tpu_custom_call.1} parent=1 // pred_region
      %45 = dma.done [#allocation9], 128
    $region13: #{tpu_custom_call.1} parent=1 // pred_fallthru
      _
    // Predicated region
    $region14: #{tpu_custom_call.1} parent=1 // pred_check
      _
    $region15: #{tpu_custom_call.1} parent=1 // pred_check_branch
      %47 = sbr.rel (0) target = $region17
    $region16: #{tpu_custom_call.1} parent=1 // pred_region
      %48 = dma.done [#allocation12], 128
    $region17: #{tpu_custom_call.1} parent=1 // pred_fallthru
      _
    %s49 = sadd.s32 0, 0
    %p50 = scmp.lt.s32.totalorder %s49, 0
    %s51 = scalar_select %p50, %s49, 0
    %s52 = sadd.s32 0, 0
    %p53 = scmp.lt.s32.totalorder %s52, 0
    %s54 = scalar_select %p53, %s52, 0
    %p55 = scmp.eq.s32.totalorder 0, 0
    // Predicated region
    $region18: #{tpu_custom_call.1} parent=1 // pred_check
      %p56 = pneg %p55
    $region19: #{tpu_custom_call.1} parent=1 // pred_check_branch
      %58 = sbr.rel (%p56) target = $region21
    $region20: #{tpu_custom_call.1} parent=1 // pred_region
      %vm59 = vcmask 0
      %60 = vst.msk [vmem:[#allocation2] sm:$0x1] %vm59, 0.0
      %vm61 = vcmask 261120
      %62 = vst.msk [vmem:[#allocation3] sm:$0xff] %vm61, 0.0
      %63 = vst.msk [vmem:[#allocation4] sm:$0xff] %vm61, 0.0
      %64 = vst.msk [vmem:[#allocation5] sm:$0xff] %vm61, 0.0
      %65 = vst.msk [vmem:[#allocation6] sm:$0xff] %vm61, 0.0
      %66 = vst.msk [vmem:[#allocation7] sm:$0xff] %vm61, 0.0
    $region21: #{tpu_custom_call.1} parent=1 // pred_fallthru
      _
    %s67 = sadd.s32 0, 0
    %s68 = smul.u32 %s67, 8
    %s69 = sadd.s32 %s68, 8
    %p70 = scmp.le.s32.totalorder %s69, 8
    // Predicated region
    $region22: #{tpu_custom_call.1} parent=1 // pred_check
      %p71 = pneg %p70
    $region23: #{tpu_custom_call.1} parent=1 // pred_check_branch
      %73 = sbr.rel (%p71) target = $region25
    $region24: #{tpu_custom_call.1} parent=1 // pred_region
      %v74 = vld [vmem:[#allocation8] sm:$0xff]
      %v75 = vld [vmem:[#allocation11] sm:$0xff]
      %vm76 = vcmask 261120
      %v77 = vsel %vm76, %v74, -inf
      %78 = vmax.xlane.f32.xlu0 %v77
      %v79 = vpop.xlane.xlu0 %78
      %v80 = vsub.f32 %v74, %v79
      %v81 = vmul.f32 %v80, 1.442695
      %v82 = vpow.pop %v81
      %v83 = vsel %vm76, %v82, 0.0
      %84 = vadd.xlane.f32.xlu0 %v83
      %v85 = vpop.xlane.xlu0 %84
      %v86 = vrcp.pop %v85
      %v87 = vmul.f32 %v82, %v86
      %v88 = vsub.f32 %v87, 0.03125
      %v89 = vsel %vm76, %v75, -inf
      %90 = vmax.xlane.f32.xlu0 %v89
      %v91 = vpop.xlane.xlu0 %90
      %v92 = vsub.f32 %v75, %v91
      %v93 = vmul.f32 %v92, 1.442695
      %v94 = vpow.pop %v93
      %v95 = vsel %vm76, %v94, 0.0
      %96 = vadd.xlane.f32.xlu0 %v95
      %v97 = vpop.xlane.xlu0 %96
      %v98 = vrcp.pop %v97
      %v99 = vmul.f32 %v94, %v98
      %v100 = vsub.f32 %v99, 0.03125
      %v101 = vmul.f32 %v88, %v100
      %v102 = vsel %vm76, %v101, 0.0
      %103 = vadd.xlane.f32.xlu0 %v102
      %v104 = vpop.xlane.xlu0 %103
      %v105 = vld [vmem:[#allocation5] sm:$0xff]
      %v106 = vadd.f32 %v105, %v101
      %107 = vst.msk [vmem:[#allocation5] sm:$0xff] %vm76, %v106
      %v108 = vmul.f32 %v88, %v88
      %v109 = vsel %vm76, %v108, 0.0
      %110 = vadd.xlane.f32.xlu0 %v109
      %v111 = vpop.xlane.xlu0 %110
      %v112 = vld [vmem:[#allocation6] sm:$0xff]
      %v113 = vadd.f32 %v112, %v108
      %114 = vst.msk [vmem:[#allocation6] sm:$0xff] %vm76, %v113
      %v115 = vmul.f32 %v100, %v100
      %v116 = vsel %vm76, %v115, 0.0
      %117 = vadd.xlane.f32.xlu0 %v116
      %v118 = vpop.xlane.xlu0 %117
      %v119 = vld [vmem:[#allocation7] sm:$0xff]
      %v120 = vadd.f32 %v119, %v115
      %121 = vst.msk [vmem:[#allocation7] sm:$0xff] %vm76, %v120
      %v122 = vld [vmem:[#allocation3] sm:$0xff]
      %v123 = vadd.f32 %v122, %v88
      %124 = vst.msk [vmem:[#allocation3] sm:$0xff] %vm76, %v123
      %v125 = vld [vmem:[#allocation4] sm:$0xff]
      %v126 = vadd.f32 %v125, %v100
      %127 = vst.msk [vmem:[#allocation4] sm:$0xff] %vm76, %v126
      %v128 = vrsqrt.pop %v111
      %v129 = vmul.f32 %v111, %v128
      %vm130 = vcmp.eq.f32.partialorder %v111, inf
      %v131 = vsel %vm130, %v111, %v129
      %vm132 = vcmp.eq.f32.partialorder %v111, 0.0
      %v133 = vand.u32 %v111, 2147483648
      %v134 = vsel %vm132, %v133, %v131
      %v135 = vrsqrt.pop %v118
      %v136 = vmul.f32 %v118, %v135
      %vm137 = vcmp.eq.f32.partialorder %v118, inf
      %v138 = vsel %vm137, %v118, %v136
      %vm139 = vcmp.eq.f32.partialorder %v118, 0.0
      %v140 = vand.u32 %v118, 2147483648
      %v141 = vsel %vm139, %v140, %v138
      %v142 = vmul.f32 %v134, %v141
      %v143 = vadd.f32 %v142, 1e-08
      %v144 = vrcp.pop %v143
      %v145 = vmul.f32 %v104, %v144
      %v146 = vld [vmem:[#allocation2] sm:$0x1]
      %v147 = vrot.slane %v145, 4
      %v148 = vadd.f32 %v145, %v147
      %v149 = vrot.slane %v148, 2
      %v150 = vadd.f32 %v148, %v149
      %v151 = vrot.slane %v150, 1
      %v152 = vadd.f32 %v150, %v151
      %v153 = vadd.f32 %v146, %v152
      %vm154 = vcmask 0
      %155 = vst.msk [vmem:[#allocation2] sm:$0x1] %vm154, %v153
    $region25: #{tpu_custom_call.1} parent=1 // pred_fallthru
      _
    %p156 = scmp.gt.s32.totalorder %s69, 8
    // Predicated region
    $region26: #{tpu_custom_call.1} parent=1 // pred_check
      %p157 = pneg %p156
    $region27: #{tpu_custom_call.1} parent=1 // pred_check_branch
      %159 = sbr.rel (%p157) target = $region29
    $region28: #{tpu_custom_call.1} parent=1 // pred_region
      %v160 = vld [vmem:[#allocation8] sm:$0xff]
      %v161 = vld [vmem:[#allocation11] sm:$0xff]
      %v162 = vlaneseq
      %v163 = vshrl.u32 %v162, 7
      %v164 = vstv %s68
      %v165 = vadd.s32 %v164, %v163
      %vm166 = vcmp.lt.s32.totalorder %v165, 8
      %v167 = vsel %vm166, 1, 0
      %vm168 = vcmp.eq.s32.totalorder %v167, 1
      %v169 = vsel %vm168, %v160, 0.0
      %v170 = vsel %vm168, %v161, 0.0
      %vm171 = vcmask 261120
      %v172 = vsel %vm171, %v169, -inf
      %173 = vmax.xlane.f32.xlu0 %v172
      %v174 = vpop.xlane.xlu0 %173
      %v175 = vsub.f32 %v169, %v174
      %v176 = vmul.f32 %v175, 1.442695
      %v177 = vpow.pop %v176
      %v178 = vsel %vm171, %v177, 0.0
      %179 = vadd.xlane.f32.xlu0 %v178
      %v180 = vpop.xlane.xlu0 %179
      %v181 = vrcp.pop %v180
      %v182 = vmul.f32 %v177, %v181
      %v183 = vsub.f32 %v182, 0.03125
      %v184 = vsel %vm171, %v170, -inf
      %185 = vmax.xlane.f32.xlu0 %v184
      %v186 = vpop.xlane.xlu0 %185
      %v187 = vsub.f32 %v170, %v186
      %v188 = vmul.f32 %v187, 1.442695
      %v189 = vpow.pop %v188
      %v190 = vsel %vm171, %v189, 0.0
      %191 = vadd.xlane.f32.xlu0 %v190
      %v192 = vpop.xlane.xlu0 %191
      %v193 = vrcp.pop %v192
      %v194 = vmul.f32 %v189, %v193
      %v195 = vsub.f32 %v194, 0.03125
      %v196 = vsel %vm168, %v183, 0.0
      %v197 = vsel %vm168, %v195, 0.0
      %v198 = vmul.f32 %v196, %v197
      %v199 = vsel %vm171, %v198, 0.0
      %200 = vadd.xlane.f32.xlu0 %v199
      %v201 = vpop.xlane.xlu0 %200
      %v202 = vld [vmem:[#allocation5] sm:$0xff]
      %v203 = vadd.f32 %v202, %v198
      %204 = vst.msk [vmem:[#allocation5] sm:$0xff] %vm171, %v203
      %v205 = vmul.f32 %v196, %v196
      %v206 = vsel %vm171, %v205, 0.0
      %207 = vadd.xlane.f32.xlu0 %v206
      %v208 = vpop.xlane.xlu0 %207
      %v209 = vld [vmem:[#allocation6] sm:$0xff]
      %v210 = vadd.f32 %v209, %v205
      %211 = vst.msk [vmem:[#allocation6] sm:$0xff] %vm171, %v210
      %v212 = vmul.f32 %v197, %v197
      %v213 = vsel %vm171, %v212, 0.0
      %214 = vadd.xlane.f32.xlu0 %v213
      %v215 = vpop.xlane.xlu0 %214
      %v216 = vld [vmem:[#allocation7] sm:$0xff]
      %v217 = vadd.f32 %v216, %v212
      %218 = vst.msk [vmem:[#allocation7] sm:$0xff] %vm171, %v217
      %v219 = vld [vmem:[#allocation3] sm:$0xff]
      %v220 = vadd.f32 %v219, %v196
      %221 = vst.msk [vmem:[#allocation3] sm:$0xff] %vm171, %v220
      %v222 = vld [vmem:[#allocation4] sm:$0xff]
      %v223 = vadd.f32 %v222, %v197
      %224 = vst.msk [vmem:[#allocation4] sm:$0xff] %vm171, %v223
      %v225 = vrsqrt.pop %v208
      %v226 = vmul.f32 %v208, %v225
      %vm227 = vcmp.eq.f32.partialorder %v208, inf
      %v228 = vsel %vm227, %v208, %v226
      %vm229 = vcmp.eq.f32.partialorder %v208, 0.0
      %v230 = vand.u32 %v208, 2147483648
      %v231 = vsel %vm229, %v230, %v228
      %v232 = vrsqrt.pop %v215
      %v233 = vmul.f32 %v215, %v232
      %vm234 = vcmp.eq.f32.partialorder %v215, inf
      %v235 = vsel %vm234, %v215, %v233
      %vm236 = vcmp.eq.f32.partialorder %v215, 0.0
      %v237 = vand.u32 %v215, 2147483648
      %v238 = vsel %vm236, %v237, %v235
      %v239 = vmul.f32 %v231, %v238
      %v240 = vadd.f32 %v239, 1e-08
      %v241 = vrcp.pop %v240
      %v242 = vmul.f32 %v201, %v241
      %v243 = vld [vmem:[#allocation2] sm:$0x1]
      %v244 = vrot.slane %v242, 4
      %v245 = vadd.f32 %v242, %v244
      %v246 = vrot.slane %v245, 2
      %v247 = vadd.f32 %v245, %v246
      %v248 = vrot.slane %v247, 1
      %v249 = vadd.f32 %v247, %v248
      %v250 = vadd.f32 %v243, %v249
      %vm251 = vcmask 0
      %252 = vst.msk [vmem:[#allocation2] sm:$0x1] %vm251, %v250
    $region29: #{tpu_custom_call.1} parent=1 // pred_fallthru
      _
    // Predicated region
    $region30: #{tpu_custom_call.1} parent=1 // pred_check
      %p253 = pneg %p55
    $region31: #{tpu_custom_call.1} parent=1 // pred_check_branch
      %255 = sbr.rel (%p253) target = $region33
    $region32: #{tpu_custom_call.1} parent=1 // pred_region
      %v256 = vld [vmem:[#allocation2] sm:$0x1]
      %vm257 = vcmask 0
      %258 = vst.msk [vmem:[#allocation13] sm:$0x1] %vm257, %v256
      %v259 = vld [vmem:[#allocation3] sm:$0xff]
      %vm260 = vcmask 261120
      %261 = vst.msk [vmem:[#allocation14] sm:$0xff] %vm260, %v259
      %v262 = vld [vmem:[#allocation4] sm:$0xff]
      %s263 = scalar_lea.vmem [#allocation14], 8
      %264 = vst.msk [vmem:[%s263] sm:$0xff] %vm260, %v262
      %v265 = vld [vmem:[#allocation5] sm:$0xff]
      %s266 = scalar_lea.vmem [#allocation14], 16
      %267 = vst.msk [vmem:[%s266] sm:$0xff] %vm260, %v265
      %v268 = vld [vmem:[#allocation6] sm:$0xff]
      %s269 = scalar_lea.vmem [#allocation14], 24
      %270 = vst.msk [vmem:[%s269] sm:$0xff] %vm260, %v268
      %v271 = vld [vmem:[#allocation7] sm:$0xff]
      %s272 = scalar_lea.vmem [#allocation14], 32
      %273 = vst.msk [vmem:[%s272] sm:$0xff] %vm260, %v271
    $region33: #{tpu_custom_call.1} parent=1 // pred_fallthru
      _
    // Predicated region
    $region34: #{tpu_custom_call.1} parent=1 // pred_check
      _
    $region35: #{tpu_custom_call.1} parent=1 // pred_check_branch
      %275 = sbr.rel (0) target = $region37
    $region36: #{tpu_custom_call.1} parent=1 // pred_region
      %s277 = ssub.s32 16, 16
      %278 = vsyncadd [#allocation10], %s277
      %s280 = sshll.u32 [#allocation13], 4
      %s281 = int_to_ptr.vmem [resolvable:$true] %s280
      %283 = dma.vmem_to_hbm [thread:$0]  %s281, 16, %s2, [#allocation10]
    $region37: #{tpu_custom_call.1} parent=1 // pred_fallthru
      _
    // Predicated region
    $region38: #{tpu_custom_call.1} parent=1 // pred_check
      _
    $region39: #{tpu_custom_call.1} parent=1 // pred_check_branch
      %285 = sbr.rel (0) target = $region41
    $region40: #{tpu_custom_call.1} parent=1 // pred_region
      %s287 = ssub.s32 640, 640
      %288 = vsyncadd [#allocation15], %s287
      %s289 = sshll.u32 [#allocation14], 4
      %s290 = int_to_ptr.vmem [resolvable:$true] %s289
      %295 = dma.vmem_to_hbm [thread:$0]  %s290, 640, %s3, [#allocation15], 128, 128, 8
    $region41: #{tpu_custom_call.1} parent=1 // pred_fallthru
      _
    // Predicated region
    $region42: #{tpu_custom_call.1} parent=1 // pred_check
      _
    $region43: #{tpu_custom_call.1} parent=1 // pred_check_branch
      %297 = sbr.rel (0) target = $region45
    $region44: #{tpu_custom_call.1} parent=1 // pred_region
      %298 = dma.done [#allocation10], 16
    $region45: #{tpu_custom_call.1} parent=1 // pred_fallthru
      _
    // Predicated region
    $region46: #{tpu_custom_call.1} parent=1 // pred_check
      _
    $region47: #{tpu_custom_call.1} parent=1 // pred_check_branch
      %300 = sbr.rel (0) target = $region49
    $region48: #{tpu_custom_call.1} parent=1 // pred_region
      %301 = dma.done [#allocation15], 640
    $region49: #{tpu_custom_call.1} parent=1 // pred_fallthru
      _
    %302 = vsyncpa [#allocation9], 1
    %303 = vsyncpa [#allocation12], 1
    %304 = vsyncpa [#allocation10], 1
    %305 = vsyncpa [#allocation15], 1

</llo_original>
